<compile_context>
chip_gen: v5e
topology: v5e:2x2
jax: 0.10.0
libtpu: 0.0.40
codegen_flags: <defaults>
</compile_context>

<pallas_src>
import functools

import jax
import jax.numpy as jnp
from jax.experimental import pallas as pl
from jax.experimental.pallas import tpu as pltpu

LANE = 128
SUBLANE = 8


def _round_up(n, m):
    return ((n + m - 1) // m) * m


def _pad2(a, rows, cols):
    r, c = a.shape
    return jnp.pad(a, ((0, rows - r), (0, cols - c)))


def _pick_batch_tile(batch, tb_cap):
    """Rows per grid step and padded batch size."""
    b8 = _round_up(max(batch, 1), SUBLANE)
    if b8 < 2 * SUBLANE:
        return b8, b8
    # >= 2 grid steps so ("parallel",) can use v7x's second TensorCore; the cap
    # keeps each step a single M pass on the 256-wide MXU (v6e/v7x).
    # On v5e a 128 cap is equivalent or better (128-wide MXU) -- sweep tb_cap.
    tb = min(tb_cap, _round_up((b8 + 1) // 2, SUBLANE))
    b_p = _round_up(b8, tb)
    return tb, b_p


# ----------------------------- Pallas kernel ------------------------------
def _vae_fwd_kernel(
    latent_dim,
    x_ref, eps_ref,
    w_e1_ref, b_e1_ref, w_e2_ref, b_e2_ref,
    w_hd_ref, b_hd_ref,
    w_d1_ref, b_d1_ref, w_d2_ref, b_d2_ref, w_d3_ref, b_d3_ref,
    xout_ref, ml_ref,
):
    f32 = jnp.float32
    bf16 = jnp.bfloat16

    def linear(a, w_ref, b_ref):
        # bf16 operands feed the MXU; accumulation stays in f32.
        return (jnp.dot(a.astype(bf16), w_ref[...], preferred_element_type=f32)
                + b_ref[...])

    def relu(v):
        return jnp.maximum(v, 0.0)

    def softplus(v):
        # stable softplus: max(x,0) + log(1 + exp(-|x|))
        return jnp.maximum(v, 0.0) + jnp.log(1.0 + jnp.exp(-jnp.abs(v)))

    # ---- encoder ----
    h = relu(linear(x_ref[...], w_e1_ref, b_e1_ref))      # (TB, H_P) f32
    h = relu(linear(h, w_e2_ref, b_e2_ref))                # (TB, H_P)

    # ---- fused mean | softplus(logvar) head (one 128-wide matmul) ----
    head = linear(h, w_hd_ref, b_hd_ref)                   # (TB, HEAD_P)
    head_p = head.shape[1]
    col = jax.lax.broadcasted_iota(jnp.int32, head.shape, 1)
    is_lv = jnp.logical_and(col >= latent_dim, col < 2 * latent_dim)
    ml = jnp.where(is_lv, softplus(head), head)            # [mean | sp(logvar) | 0]
    ml_ref[...] = ml                                        # lane-dense 128-wide store

    # ---- reparameterize: z = eps * exp(0.5*logvar) + mean, full-lane ----
    # Align logvar onto lanes [0:latent) with an XLU roll (no masked sub-vreg
    # slicing), zero the wrapped lanes so exp() stays bounded, then compute the
    # whole (TB, HEAD_P) slab.  Lanes >= latent_dim carry junk that is killed by
    # the zero-padded rows of w_d1.
    lv_aligned = pltpu.roll(ml, shift=head_p - latent_dim, axis=1)
    lv_aligned = jnp.where(col < latent_dim, lv_aligned, 0.0)
    z_full = eps_ref[...] * jnp.exp(0.5 * lv_aligned) + ml  # (TB, HEAD_P)

    # ---- decoder ----
    d = relu(linear(z_full, w_d1_ref, b_d1_ref))            # (TB, H_P)
    d = relu(linear(d, w_d2_ref, b_d2_ref))                 # (TB, H_P)
    logits = linear(d, w_d3_ref, b_d3_ref)                  # (TB, D_P)

    # sigmoid via tanh -> EUP slot (idle otherwise), not a VPU divide
    xout_ref[...] = 0.5 * jnp.tanh(0.5 * logits) + 0.5


# ------------------------------ factory / wrapper ---------------------------
def make_vae_forward(params, *, tb_cap=256):
    """One-time weight preparation; returns a jitted forward(x_nchw, eps).

    params: dict of (in, out) f32 weights and (1, out) f32 bias rows.
    Returned forward(x_nchw, eps) -> (x_out, z_mean, z_logvar), matching the
    PyTorch module (eps replaces torch.randn_like for determinism).
    """
    f32, bf16 = jnp.float32, jnp.bfloat16

    input_dim = params["w_d3"].shape[1]
    hidden_dim = params["w_e1"].shape[1]
    latent_dim = params["w_mu"].shape[1]

    # lane-padded feature dims (multiples of 128)
    d_p = _round_up(input_dim, LANE)
    h_p = _round_up(hidden_dim, LANE)
    head_p = _round_up(2 * latent_dim, LANE)

    # fused mean|logvar head: [w_mu | w_lv | 0] -> (hidden, HEAD_P)
    w_head = jnp.concatenate([params["w_mu"], params["w_lv"]], axis=1)
    b_head = jnp.concatenate([params["b_mu"], params["b_lv"]], axis=1)

    # Zero-padded bf16 weights + lane-padded f32 biases, prepared ONCE.
    # NOTE: w_d1 rows are zero-padded from latent_dim up to head_p so the junk
    # lanes of the full-lane reparameterized slab contribute nothing.
    padded = [
        (_pad2(params["w_e1"], d_p, h_p),    _pad2(params["b_e1"], 1, h_p)),
        (_pad2(params["w_e2"], h_p, h_p),    _pad2(params["b_e2"], 1, h_p)),
        (_pad2(w_head, h_p, head_p),         _pad2(b_head, 1, head_p)),
        (_pad2(params["w_d1"], head_p, h_p), _pad2(params["b_d1"], 1, h_p)),
        (_pad2(params["w_d2"], h_p, h_p),    _pad2(params["b_d2"], 1, h_p)),
        (_pad2(params["w_d3"], h_p, d_p),    _pad2(params["b_d3"], 1, d_p)),
    ]
    wb = []
    for w, b in padded:
        wb.append(w.astype(bf16))
        wb.append(b.astype(f32))

    def resident_spec(arr):
        # constant index_map -> weights/biases stay VMEM-resident across batch tiles
        return pl.BlockSpec(arr.shape, lambda i: (0, 0))

    weight_specs = [resident_spec(a) for a in wb]
    weight_bytes = sum(int(a.size) * a.dtype.itemsize for a in wb)

    kernel = functools.partial(_vae_fwd_kernel, latent_dim)

    @jax.jit
    def forward(x_nchw, eps):
        B = x_nchw.shape[0]
        x_flat = x_nchw.reshape(B, -1)
        assert x_flat.shape[1] == input_dim
        assert eps.shape == (B, latent_dim)

        tb, b_p = _pick_batch_tile(B, tb_cap)
        grid = (b_p // tb,)

        # bf16 activation tile (halves HBM->VMEM DMA); eps lane-padded to the
        # full head width so its load and the reparameterize math are full-lane.
        x_p = _pad2(x_flat.astype(bf16), b_p, d_p)
        eps_p = _pad2(eps.astype(f32), b_p, head_p)

        def batch_spec(cols):
            return pl.BlockSpec((tb, cols), lambda i: (i, 0))

        in_specs = [batch_spec(d_p), batch_spec(head_p)] + weight_specs
        out_shapes = (
            jax.ShapeDtypeStruct((b_p, d_p), f32),     # sigmoid(x_logits)
            jax.ShapeDtypeStruct((b_p, head_p), f32),  # [mean | softplus(logvar) | 0]
        )
        out_specs = (batch_spec(d_p), batch_spec(head_p))

        # Tight-but-safe VMEM budget from the real footprint: double-buffered
        # activation/output tiles + (conservatively double-buffered) resident
        # weights + headroom for the live f32 intermediates.
        act_bytes = 2 * (tb * d_p * 2 + tb * head_p * 4)
        out_bytes = 2 * (tb * d_p * 4 + tb * head_p * 4)
        scratch_bytes = 6 * tb * max(h_p, d_p, head_p) * 4
        vmem_limit = int(2 * weight_bytes + act_bytes + out_bytes
                         + scratch_bytes + (4 << 20))

        x_out_p, ml_p = pl.pallas_call(
            kernel,
            out_shape=out_shapes,
            grid_spec=pltpu.PrefetchScalarGridSpec(
                num_scalar_prefetch=0,
                grid=grid,
                in_specs=in_specs,
                out_specs=out_specs,
            ),
            compiler_params=pltpu.CompilerParams(
                dimension_semantics=("parallel",),
                vmem_limit_bytes=vmem_limit,
            ),
        )(x_p, eps_p, *wb)

        # free layout plumbing: strip batch/lane padding, split the fused head
        x_out = x_out_p[:B, :input_dim]
        z_mean = ml_p[:B, :latent_dim]
        z_logvar = ml_p[:B, latent_dim:2 * latent_dim]
        return x_out, z_mean, z_logvar

    return forward


# ------------------------- parameter construction -------------------------
def init_params(key, input_dim, hidden_dim, latent_dim):
    """Deterministic synthetic parameters (weights as (in, out), biases as (1, out))."""
    dims = {
        "e1": (input_dim, hidden_dim),
        "e2": (hidden_dim, hidden_dim),
        "mu": (hidden_dim, latent_dim),
        "lv": (hidden_dim, latent_dim),
        "d1": (latent_dim, hidden_dim),
        "d2": (hidden_dim, hidden_dim),
        "d3": (hidden_dim, input_dim),
    }
    params = {}
    for name, (din, dout) in dims.items():
        key, kw, kb = jax.random.split(key, 3)
        scale = 1.0 / jnp.sqrt(jnp.float32(din))
        params[f"w_{name}"] = jax.random.normal(kw, (din, dout), jnp.float32) * scale
        params[f"b_{name}"] = jax.random.normal(kb, (1, dout), jnp.float32) * 0.01
    return params


# ----------------------------- reference ----------------------------------
def vae_forward_ref(x_nchw, eps, params):
    """Pure-JAX reference with the same bf16-matmul / f32-accumulate math."""
    def mm(a, w):
        return jnp.dot(a.astype(jnp.bfloat16), w.astype(jnp.bfloat16),
                       preferred_element_type=jnp.float32)

    x = x_nchw.reshape(x_nchw.shape[0], -1).astype(jnp.float32)
    h = jax.nn.relu(mm(x, params["w_e1"]) + params["b_e1"])
    h = jax.nn.relu(mm(h, params["w_e2"]) + params["b_e2"])
    mean = mm(h, params["w_mu"]) + params["b_mu"]
    logvar = jax.nn.softplus(mm(h, params["w_lv"]) + params["b_lv"])
    z = eps * jnp.exp(0.5 * logvar) + mean
    d = jax.nn.relu(mm(z, params["w_d1"]) + params["b_d1"])
    d = jax.nn.relu(mm(d, params["w_d2"]) + params["b_d2"])
    x_out = jax.nn.sigmoid(mm(d, params["w_d3"]) + params["b_d3"])
    return x_out, mean, logvar


# -------------------------------- main -------------------------------------
if __name__ == "__main__":
    # Small shapes consistent with the module: input_dim = C*H*W = 1*16*16 = 256
    B, C, H, W = 8, 1, 16, 16
    input_dim = C * H * W
    hidden_dim = 64
    latent_dim = 32

    key = jax.random.PRNGKey(0)
    k_x, k_eps, k_params = jax.random.split(key, 3)

    x = jax.random.normal(k_x, (B, C, H, W), jnp.float32)
    eps = jax.random.normal(k_eps, (B, latent_dim), jnp.float32)
    params = init_params(k_params, input_dim, hidden_dim, latent_dim)

    # One-time weight prep (hoisted out of the per-call path), then run.
    forward = make_vae_forward(params)
    x_out, z_mean, z_logvar = forward(x, eps)
    jax.block_until_ready((x_out, z_mean, z_logvar))

    # correctness check against a pure-JAX reference of the same math
    x_out_r, z_mean_r, z_logvar_r = vae_forward_ref(x, eps, params)
    assert x_out.shape == (B, input_dim)
    assert z_mean.shape == (B, latent_dim) and z_logvar.shape == (B, latent_dim)
    assert jnp.allclose(x_out, x_out_r, atol=2e-2, rtol=2e-2)
    assert jnp.allclose(z_mean, z_mean_r, atol=2e-2, rtol=2e-2)
    assert jnp.allclose(z_logvar, z_logvar_r, atol=2e-2, rtol=2e-2)

    print("KERNEL_OK")
</pallas_src>

<mosaic_0001>
module attributes {stable_mosaic.version = 11 : i64} {
  func.func @_vae_fwd_kernel(%arg0: i32, %arg1: memref<8x256xbf16, #tpu.memory_space<vmem>>, %arg2: memref<8x128xf32, #tpu.memory_space<vmem>>, %arg3: memref<256x128xbf16, #tpu.memory_space<vmem>>, %arg4: memref<1x128xf32, #tpu.memory_space<vmem>>, %arg5: memref<128x128xbf16, #tpu.memory_space<vmem>>, %arg6: memref<1x128xf32, #tpu.memory_space<vmem>>, %arg7: memref<128x128xbf16, #tpu.memory_space<vmem>>, %arg8: memref<1x128xf32, #tpu.memory_space<vmem>>, %arg9: memref<128x128xbf16, #tpu.memory_space<vmem>>, %arg10: memref<1x128xf32, #tpu.memory_space<vmem>>, %arg11: memref<128x128xbf16, #tpu.memory_space<vmem>>, %arg12: memref<1x128xf32, #tpu.memory_space<vmem>>, %arg13: memref<128x256xbf16, #tpu.memory_space<vmem>>, %arg14: memref<1x256xf32, #tpu.memory_space<vmem>>, %arg15: memref<8x256xf32, #tpu.memory_space<vmem>>, %arg16: memref<8x128xf32, #tpu.memory_space<vmem>>) attributes {dimension_semantics = [#tpu.dimension_semantics<parallel>], iteration_bounds = array<i64: 1>, scalar_prefetch = 0 : i64, scratch_operands = 0 : i64, tpu.core_type = #tpu.core_type<tc>, window_params = [{transform_indices = @transform_0, window_bounds = array<i64: 8, 256>}, {transform_indices = @transform_1, window_bounds = array<i64: 8, 128>}, {pipeline_mode = #tpu.pipeline_mode<synchronous>, transform_indices = @transform_2, window_bounds = array<i64: 256, 128>}, {pipeline_mode = #tpu.pipeline_mode<synchronous>, transform_indices = @transform_3, window_bounds = array<i64: 1, 128>}, {pipeline_mode = #tpu.pipeline_mode<synchronous>, transform_indices = @transform_4, window_bounds = array<i64: 128, 128>}, {pipeline_mode = #tpu.pipeline_mode<synchronous>, transform_indices = @transform_5, window_bounds = array<i64: 1, 128>}, {pipeline_mode = #tpu.pipeline_mode<synchronous>, transform_indices = @transform_6, window_bounds = array<i64: 128, 128>}, {pipeline_mode = #tpu.pipeline_mode<synchronous>, transform_indices = @transform_7, window_bounds = array<i64: 1, 128>}, {pipeline_mode = #tpu.pipeline_mode<synchronous>, transform_indices = @transform_8, window_bounds = array<i64: 128, 128>}, {pipeline_mode = #tpu.pipeline_mode<synchronous>, transform_indices = @transform_9, window_bounds = array<i64: 1, 128>}, {pipeline_mode = #tpu.pipeline_mode<synchronous>, transform_indices = @transform_10, window_bounds = array<i64: 128, 128>}, {pipeline_mode = #tpu.pipeline_mode<synchronous>, transform_indices = @transform_11, window_bounds = array<i64: 1, 128>}, {pipeline_mode = #tpu.pipeline_mode<synchronous>, transform_indices = @transform_12, window_bounds = array<i64: 128, 256>}, {pipeline_mode = #tpu.pipeline_mode<synchronous>, transform_indices = @transform_13, window_bounds = array<i64: 1, 256>}, {transform_indices = @transform_14, window_bounds = array<i64: 8, 256>}, {transform_indices = @transform_15, window_bounds = array<i64: 8, 128>}]} {
    %c0 = arith.constant 0 : index
    %c0_0 = arith.constant 0 : index
    %0 = vector.load %arg1[%c0, %c0_0] : memref<8x256xbf16, #tpu.memory_space<vmem>>, vector<8x256xbf16>
    %c0_1 = arith.constant 0 : index
    %c0_2 = arith.constant 0 : index
    %1 = vector.load %arg3[%c0_1, %c0_2] : memref<256x128xbf16, #tpu.memory_space<vmem>>, vector<256x128xbf16>
    %cst = arith.constant dense<0.000000e+00> : vector<8x128xf32>
    %2 = tpu.matmul %0, %1, %cst {dimension_numbers = #tpu.dot_dimension_numbers<[1], [0], [0], [1], [0, 0, 1, 1], [], []>} : vector<8x256xbf16>, vector<256x128xbf16>, vector<8x128xf32> -> vector<8x128xf32>
    %c0_3 = arith.constant 0 : index
    %c0_4 = arith.constant 0 : index
    %3 = vector.load %arg4[%c0_3, %c0_4] : memref<1x128xf32, #tpu.memory_space<vmem>>, vector<1x128xf32>
    %4 = vector.broadcast %3 : vector<1x128xf32> to vector<8x128xf32>
    %5 = arith.addf %2, %4 : vector<8x128xf32>
    %cst_5 = arith.constant 0.000000e+00 : f32
    %6 = vector.broadcast %cst_5 : f32 to vector<8x128xf32>
    %7 = arith.maximumf %5, %6 : vector<8x128xf32>
    %8 = arith.truncf %7 : vector<8x128xf32> to vector<8x128xbf16>
    %c0_6 = arith.constant 0 : index
    %c0_7 = arith.constant 0 : index
    %9 = vector.load %arg5[%c0_6, %c0_7] : memref<128x128xbf16, #tpu.memory_space<vmem>>, vector<128x128xbf16>
    %cst_8 = arith.constant dense<0.000000e+00> : vector<8x128xf32>
    %10 = tpu.matmul %8, %9, %cst_8 {dimension_numbers = #tpu.dot_dimension_numbers<[1], [0], [0], [1], [0, 0, 1, 1], [], []>} : vector<8x128xbf16>, vector<128x128xbf16>, vector<8x128xf32> -> vector<8x128xf32>
    %c0_9 = arith.constant 0 : index
    %c0_10 = arith.constant 0 : index
    %11 = vector.load %arg6[%c0_9, %c0_10] : memref<1x128xf32, #tpu.memory_space<vmem>>, vector<1x128xf32>
    %12 = vector.broadcast %11 : vector<1x128xf32> to vector<8x128xf32>
    %13 = arith.addf %10, %12 : vector<8x128xf32>
    %cst_11 = arith.constant 0.000000e+00 : f32
    %14 = vector.broadcast %cst_11 : f32 to vector<8x128xf32>
    %15 = arith.maximumf %13, %14 : vector<8x128xf32>
    %16 = arith.truncf %15 : vector<8x128xf32> to vector<8x128xbf16>
    %c0_12 = arith.constant 0 : index
    %c0_13 = arith.constant 0 : index
    %17 = vector.load %arg7[%c0_12, %c0_13] : memref<128x128xbf16, #tpu.memory_space<vmem>>, vector<128x128xbf16>
    %cst_14 = arith.constant dense<0.000000e+00> : vector<8x128xf32>
    %18 = tpu.matmul %16, %17, %cst_14 {dimension_numbers = #tpu.dot_dimension_numbers<[1], [0], [0], [1], [0, 0, 1, 1], [], []>} : vector<8x128xbf16>, vector<128x128xbf16>, vector<8x128xf32> -> vector<8x128xf32>
    %c0_15 = arith.constant 0 : index
    %c0_16 = arith.constant 0 : index
    %19 = vector.load %arg8[%c0_15, %c0_16] : memref<1x128xf32, #tpu.memory_space<vmem>>, vector<1x128xf32>
    %20 = vector.broadcast %19 : vector<1x128xf32> to vector<8x128xf32>
    %21 = arith.addf %18, %20 : vector<8x128xf32>
    %22 = tpu.iota {dimensions = array<i32: 1>} : vector<8x128xi32>
    %c32_i32 = arith.constant 32 : i32
    %23 = vector.broadcast %c32_i32 : i32 to vector<8x128xi32>
    %24 = arith.cmpi sge, %22, %23 : vector<8x128xi32>
    %c64_i32 = arith.constant 64 : i32
    %25 = vector.broadcast %c64_i32 : i32 to vector<8x128xi32>
    %26 = arith.cmpi slt, %22, %25 : vector<8x128xi32>
    %27 = arith.andi %24, %26 : vector<8x128xi1>
    %cst_17 = arith.constant 0.000000e+00 : f32
    %28 = vector.broadcast %cst_17 : f32 to vector<8x128xf32>
    %29 = arith.maximumf %21, %28 : vector<8x128xf32>
    %30 = math.absf %21 : vector<8x128xf32>
    %cst_18 = arith.constant 0.000000e+00 : f32
    %31 = vector.broadcast %cst_18 : f32 to vector<8x128xf32>
    %32 = arith.subf %31, %30 : vector<8x128xf32>
    %33 = math.exp %32 : vector<8x128xf32>
    %cst_19 = arith.constant 1.000000e+00 : f32
    %34 = vector.broadcast %cst_19 : f32 to vector<8x128xf32>
    %35 = arith.addf %34, %33 : vector<8x128xf32>
    %36 = math.log %35 : vector<8x128xf32>
    %37 = arith.addf %29, %36 : vector<8x128xf32>
    %38 = arith.select %27, %37, %21 : vector<8x128xi1>, vector<8x128xf32>
    %c0_20 = arith.constant 0 : index
    %c0_21 = arith.constant 0 : index
    %39 = vector.load %arg16[%c0_20, %c0_21] : memref<8x128xf32, #tpu.memory_space<vmem>>, vector<8x128xf32>
    tpu.vector_store %arg16[%c0_20, %c0_21], %38 {strides = array<i32>} : memref<8x128xf32, #tpu.memory_space<vmem>>, vector<8x128xf32>,
    %c96_i32 = arith.constant 96 : i32
    %40 = tpu.dynamic_rotate %38 by %c96_i32 dim 1 : vector<8x128xf32>, i32 -> vector<8x128xf32>
    %c32_i32_22 = arith.constant 32 : i32
    %41 = vector.broadcast %c32_i32_22 : i32 to vector<8x128xi32>
    %42 = arith.cmpi slt, %22, %41 : vector<8x128xi32>
    %cst_23 = arith.constant 0.000000e+00 : f32
    %43 = vector.broadcast %cst_23 : f32 to vector<8x128xf32>
    %44 = arith.select %42, %40, %43 : vector<8x128xi1>, vector<8x128xf32>
    %c0_24 = arith.constant 0 : index
    %c0_25 = arith.constant 0 : index
    %45 = vector.load %arg2[%c0_24, %c0_25] : memref<8x128xf32, #tpu.memory_space<vmem>>, vector<8x128xf32>
    %cst_26 = arith.constant 5.000000e-01 : f32
    %46 = vector.broadcast %cst_26 : f32 to vector<8x128xf32>
    %47 = arith.mulf %46, %44 : vector<8x128xf32>
    %48 = math.exp %47 : vector<8x128xf32>
    %49 = arith.mulf %45, %48 : vector<8x128xf32>
    %50 = arith.addf %49, %38 : vector<8x128xf32>
    %51 = arith.truncf %50 : vector<8x128xf32> to vector<8x128xbf16>
    %c0_27 = arith.constant 0 : index
    %c0_28 = arith.constant 0 : index
    %52 = vector.load %arg9[%c0_27, %c0_28] : memref<128x128xbf16, #tpu.memory_space<vmem>>, vector<128x128xbf16>
    %cst_29 = arith.constant dense<0.000000e+00> : vector<8x128xf32>
    %53 = tpu.matmul %51, %52, %cst_29 {dimension_numbers = #tpu.dot_dimension_numbers<[1], [0], [0], [1], [0, 0, 1, 1], [], []>} : vector<8x128xbf16>, vector<128x128xbf16>, vector<8x128xf32> -> vector<8x128xf32>
    %c0_30 = arith.constant 0 : index
    %c0_31 = arith.constant 0 : index
    %54 = vector.load %arg10[%c0_30, %c0_31] : memref<1x128xf32, #tpu.memory_space<vmem>>, vector<1x128xf32>
    %55 = vector.broadcast %54 : vector<1x128xf32> to vector<8x128xf32>
    %56 = arith.addf %53, %55 : vector<8x128xf32>
    %cst_32 = arith.constant 0.000000e+00 : f32
    %57 = vector.broadcast %cst_32 : f32 to vector<8x128xf32>
    %58 = arith.maximumf %56, %57 : vector<8x128xf32>
    %59 = arith.truncf %58 : vector<8x128xf32> to vector<8x128xbf16>
    %c0_33 = arith.constant 0 : index
    %c0_34 = arith.constant 0 : index
    %60 = vector.load %arg11[%c0_33, %c0_34] : memref<128x128xbf16, #tpu.memory_space<vmem>>, vector<128x128xbf16>
    %cst_35 = arith.constant dense<0.000000e+00> : vector<8x128xf32>
    %61 = tpu.matmul %59, %60, %cst_35 {dimension_numbers = #tpu.dot_dimension_numbers<[1], [0], [0], [1], [0, 0, 1, 1], [], []>} : vector<8x128xbf16>, vector<128x128xbf16>, vector<8x128xf32> -> vector<8x128xf32>
    %c0_36 = arith.constant 0 : index
    %c0_37 = arith.constant 0 : index
    %62 = vector.load %arg12[%c0_36, %c0_37] : memref<1x128xf32, #tpu.memory_space<vmem>>, vector<1x128xf32>
    %63 = vector.broadcast %62 : vector<1x128xf32> to vector<8x128xf32>
    %64 = arith.addf %61, %63 : vector<8x128xf32>
    %cst_38 = arith.constant 0.000000e+00 : f32
    %65 = vector.broadcast %cst_38 : f32 to vector<8x128xf32>
    %66 = arith.maximumf %64, %65 : vector<8x128xf32>
    %67 = arith.truncf %66 : vector<8x128xf32> to vector<8x128xbf16>
    %c0_39 = arith.constant 0 : index
    %c0_40 = arith.constant 0 : index
    %68 = vector.load %arg13[%c0_39, %c0_40] : memref<128x256xbf16, #tpu.memory_space<vmem>>, vector<128x256xbf16>
    %cst_41 = arith.constant dense<0.000000e+00> : vector<8x256xf32>
    %69 = tpu.matmul %67, %68, %cst_41 {dimension_numbers = #tpu.dot_dimension_numbers<[1], [0], [0], [1], [0, 0, 1, 1], [], []>} : vector<8x128xbf16>, vector<128x256xbf16>, vector<8x256xf32> -> vector<8x256xf32>
    %c0_42 = arith.constant 0 : index
    %c0_43 = arith.constant 0 : index
    %70 = vector.load %arg14[%c0_42, %c0_43] : memref<1x256xf32, #tpu.memory_space<vmem>>, vector<1x256xf32>
    %71 = vector.broadcast %70 : vector<1x256xf32> to vector<8x256xf32>
    %72 = arith.addf %69, %71 : vector<8x256xf32>
    %cst_44 = arith.constant 5.000000e-01 : f32
    %73 = vector.broadcast %cst_44 : f32 to vector<8x256xf32>
    %74 = arith.mulf %73, %72 : vector<8x256xf32>
    %75 = math.tanh %74 : vector<8x256xf32>
    %cst_45 = arith.constant 5.000000e-01 : f32
    %76 = vector.broadcast %cst_45 : f32 to vector<8x256xf32>
    %77 = arith.mulf %76, %75 : vector<8x256xf32>
    %cst_46 = arith.constant 5.000000e-01 : f32
    %78 = vector.broadcast %cst_46 : f32 to vector<8x256xf32>
    %79 = arith.addf %77, %78 : vector<8x256xf32>
    %c0_47 = arith.constant 0 : index
    %c0_48 = arith.constant 0 : index
    %80 = vector.load %arg15[%c0_47, %c0_48] : memref<8x256xf32, #tpu.memory_space<vmem>>, vector<8x256xf32>
    tpu.vector_store %arg15[%c0_47, %c0_48], %79 {strides = array<i32>} : memref<8x256xf32, #tpu.memory_space<vmem>>, vector<8x256xf32>,
    return
  }
  func.func @transform_0(%arg0: i32) -> (i32, i32) {
    %c0_i32 = arith.constant 0 : i32
    %c0_i32_0 = arith.constant 0 : i32
    return %arg0, %c0_i32 : i32, i32
  }
  func.func @transform_1(%arg0: i32) -> (i32, i32) {
    %c0_i32 = arith.constant 0 : i32
    %c0_i32_0 = arith.constant 0 : i32
    return %arg0, %c0_i32 : i32, i32
  }
  func.func @transform_2(%arg0: i32) -> (i32, i32) {
    %c0_i32 = arith.constant 0 : i32
    %c0_i32_0 = arith.constant 0 : i32
    %c0_i32_1 = arith.constant 0 : i32
    return %c0_i32, %c0_i32_0 : i32, i32
  }
  func.func @transform_3(%arg0: i32) -> (i32, i32) {
    %c0_i32 = arith.constant 0 : i32
    %c0_i32_0 = arith.constant 0 : i32
    %c0_i32_1 = arith.constant 0 : i32
    return %c0_i32, %c0_i32_0 : i32, i32
  }
  func.func @transform_4(%arg0: i32) -> (i32, i32) {
    %c0_i32 = arith.constant 0 : i32
    %c0_i32_0 = arith.constant 0 : i32
    %c0_i32_1 = arith.constant 0 : i32
    return %c0_i32, %c0_i32_0 : i32, i32
  }
  func.func @transform_5(%arg0: i32) -> (i32, i32) {
    %c0_i32 = arith.constant 0 : i32
    %c0_i32_0 = arith.constant 0 : i32
    %c0_i32_1 = arith.constant 0 : i32
    return %c0_i32, %c0_i32_0 : i32, i32
  }
  func.func @transform_6(%arg0: i32) -> (i32, i32) {
    %c0_i32 = arith.constant 0 : i32
    %c0_i32_0 = arith.constant 0 : i32
    %c0_i32_1 = arith.constant 0 : i32
    return %c0_i32, %c0_i32_0 : i32, i32
  }
  func.func @transform_7(%arg0: i32) -> (i32, i32) {
    %c0_i32 = arith.constant 0 : i32
    %c0_i32_0 = arith.constant 0 : i32
    %c0_i32_1 = arith.constant 0 : i32
    return %c0_i32, %c0_i32_0 : i32, i32
  }
  func.func @transform_8(%arg0: i32) -> (i32, i32) {
    %c0_i32 = arith.constant 0 : i32
    %c0_i32_0 = arith.constant 0 : i32
    %c0_i32_1 = arith.constant 0 : i32
    return %c0_i32, %c0_i32_0 : i32, i32
  }
  func.func @transform_9(%arg0: i32) -> (i32, i32) {
    %c0_i32 = arith.constant 0 : i32
    %c0_i32_0 = arith.constant 0 : i32
    %c0_i32_1 = arith.constant 0 : i32
    return %c0_i32, %c0_i32_0 : i32, i32
  }
  func.func @transform_10(%arg0: i32) -> (i32, i32) {
    %c0_i32 = arith.constant 0 : i32
    %c0_i32_0 = arith.constant 0 : i32
    %c0_i32_1 = arith.constant 0 : i32
    return %c0_i32, %c0_i32_0 : i32, i32
  }
  func.func @transform_11(%arg0: i32) -> (i32, i32) {
    %c0_i32 = arith.constant 0 : i32
    %c0_i32_0 = arith.constant 0 : i32
    %c0_i32_1 = arith.constant 0 : i32
    return %c0_i32, %c0_i32_0 : i32, i32
  }
  func.func @transform_12(%arg0: i32) -> (i32, i32) {
    %c0_i32 = arith.constant 0 : i32
    %c0_i32_0 = arith.constant 0 : i32
    %c0_i32_1 = arith.constant 0 : i32
    return %c0_i32, %c0_i32_0 : i32, i32
  }
  func.func @transform_13(%arg0: i32) -> (i32, i32) {
    %c0_i32 = arith.constant 0 : i32
    %c0_i32_0 = arith.constant 0 : i32
    %c0_i32_1 = arith.constant 0 : i32
    return %c0_i32, %c0_i32_0 : i32, i32
  }
  func.func @transform_14(%arg0: i32) -> (i32, i32) {
    %c0_i32 = arith.constant 0 : i32
    %c0_i32_0 = arith.constant 0 : i32
    return %arg0, %c0_i32 : i32, i32
  }
  func.func @transform_15(%arg0: i32) -> (i32, i32) {
    %c0_i32 = arith.constant 0 : i32
    %c0_i32_0 = arith.constant 0 : i32
    return %arg0, %c0_i32 : i32, i32
  }
}

</mosaic_0001>

<llo_original>
// kernel: forward.1
$region0: #{forward.1}
  #allocation0 [shape = 'u32[]', space=smem, size = 0x4, offset = 0x4, fixed_abs, tag = 'smem constant byte address 0x4 - core index']
  #allocation1 [shape = 'u32[72,128]{1,0:T(1,128)}', space=vmem, size = 0x9000, scoped, tag = 'internal scratch']
  %s0 = inlined_call_operand.vmem [shape: bf16[8,256], index: 0, kind: input, shape index: {}]
  %s1 = inlined_call_operand.vmem [shape: f32[8,128], index: 1, kind: input, shape index: {}]
  %s2 = inlined_call_operand.vmem [shape: bf16[256,128], index: 2, kind: input, shape index: {}]
  %s3 = inlined_call_operand.vmem [shape: f32[1,128], index: 3, kind: input, shape index: {}]
  %s4 = inlined_call_operand.hbm [shape: bf16[128,128], index: 4, kind: input, shape index: {}]
  %s5 = inlined_call_operand.vmem [shape: f32[1,128], index: 5, kind: input, shape index: {}]
  %s6 = inlined_call_operand.hbm [shape: bf16[128,128], index: 6, kind: input, shape index: {}]
  %s7 = inlined_call_operand.vmem [shape: f32[1,128], index: 7, kind: input, shape index: {}]
  %s8 = inlined_call_operand.hbm [shape: bf16[128,128], index: 8, kind: input, shape index: {}]
  %s9 = inlined_call_operand.vmem [shape: f32[1,128], index: 9, kind: input, shape index: {}]
  %s10 = inlined_call_operand.hbm [shape: bf16[128,128], index: 10, kind: input, shape index: {}]
  %s11 = inlined_call_operand.vmem [shape: f32[1,128], index: 11, kind: input, shape index: {}]
  %s12 = inlined_call_operand.vmem [shape: bf16[128,256], index: 12, kind: input, shape index: {}]
  %s13 = inlined_call_operand.vmem [shape: f32[1,256], index: 13, kind: input, shape index: {}]
  %s14 = inlined_call_operand.hbm [shape: f32[8,256], index: 14, kind: output, shape index: {0}]
  %s15 = inlined_call_operand.vmem [shape: f32[8,128], index: 15, kind: output, shape index: {1}]
  %16 = xla_tuple %s14, %s15
  %s17 = sld [smem:[#allocation0]]
  $region90: #{forward.1} parent=0
    _
  %s19 = ssub.s32 1, %s17
  %s20 = scalar_select 0, %s19, %s17
  $region1: #{forward.1} parent=0
    #allocation2 [shape = 'u8[32768]{0}', space=vmem, size = 0x8000, scoped, tag = 'input window, operand 4, single buffered']
    #allocation3 [shape = 's32[1]{0}', space=sflag, size = 0x4, scoped, tag = 'scoped memory for forward.1']
    #allocation4 [shape = 's32[1]{0}', space=sflag, size = 0x4, scoped, tag = 'scoped memory for forward.1']
    #allocation5 [shape = 'u8[32768]{0}', space=vmem, size = 0x8000, scoped, tag = 'input window, operand 6, single buffered']
    #allocation6 [shape = 's32[1]{0}', space=sflag, size = 0x4, scoped, tag = 'scoped memory for forward.1']
    #allocation7 [shape = 'u8[32768]{0}', space=vmem, size = 0x8000, scoped, tag = 'input window, operand 8, single buffered']
    #allocation8 [shape = 'u8[32768]{0}', space=vmem, size = 0x8000, scoped, tag = 'input window, operand 10, single buffered']
    #allocation9 [shape = 's32[1]{0}', space=sflag, size = 0x4, scoped, tag = 'scoped memory for forward.1']
    #allocation10 [shape = 'u8[8192]{0}', space=vmem, size = 0x2000, scoped, tag = 'output window, operand 0, single buffered']
    %21 = vsyncpa [#allocation3], 0
    %22 = vsyncpa [#allocation6], 0
    %23 = vsyncpa [#allocation9], 0
    %24 = vsyncpa [#allocation4], 0
    // Predicated region
    $region2: #{forward.1} parent=1 // pred_check
      _
    $region3: #{forward.1} parent=1 // pred_check_branch
      %26 = sbr.rel (0) target = $region5
    $region4: #{forward.1} parent=1 // pred_region
      _
    $region5: #{forward.1} parent=1 // pred_fallthru
      _
    // Predicated region
    $region6: #{forward.1} parent=1 // pred_check
      _
    $region7: #{forward.1} parent=1 // pred_check_branch
      %28 = sbr.rel (0) target = $region9
    $region8: #{forward.1} parent=1 // pred_region
      _
    $region9: #{forward.1} parent=1 // pred_fallthru
      _
    // Predicated region
    $region10: #{forward.1} parent=1 // pred_check
      _
    $region11: #{forward.1} parent=1 // pred_check_branch
      %30 = sbr.rel (0) target = $region13
    $region12: #{forward.1} parent=1 // pred_region
      _
    $region13: #{forward.1} parent=1 // pred_fallthru
      _
    // Predicated region
    $region14: #{forward.1} parent=1 // pred_check
      _
    $region15: #{forward.1} parent=1 // pred_check_branch
      %32 = sbr.rel (0) target = $region17
    $region16: #{forward.1} parent=1 // pred_region
      _
    $region17: #{forward.1} parent=1 // pred_fallthru
      _
    // Predicated region
    $region18: #{forward.1} parent=1 // pred_check
      _
    $region19: #{forward.1} parent=1 // pred_check_branch
      %34 = sbr.rel (0) target = $region21
    $region20: #{forward.1} parent=1 // pred_region
      %36 = vsyncadd [#allocation3], 0
      %s37 = sshll.u32 %s4, 4
      %s38 = int_to_ptr.hbm [resolvable:$true] %s37
      %s39 = sshll.u32 [#allocation2], 4
      %s40 = int_to_ptr.vmem [resolvable:$true] %s39
      %45 = dma.hbm_to_vmem [thread:$0]  %s38, 1024, %s40, [#allocation3], 64, 64, 4
    $region21: #{forward.1} parent=1 // pred_fallthru
      _
    // Predicated region
    $region22: #{forward.1} parent=1 // pred_check
      _
    $region23: #{forward.1} parent=1 // pred_check_branch
      %47 = sbr.rel (0) target = $region25
    $region24: #{forward.1} parent=1 // pred_region
      _
    $region25: #{forward.1} parent=1 // pred_fallthru
      _
    // Predicated region
    $region26: #{forward.1} parent=1 // pred_check
      _
    $region27: #{forward.1} parent=1 // pred_check_branch
      %49 = sbr.rel (0) target = $region29
    $region28: #{forward.1} parent=1 // pred_region
      %51 = vsyncadd [#allocation6], 0
      %s52 = sshll.u32 %s6, 4
      %s53 = int_to_ptr.hbm [resolvable:$true] %s52
      %s54 = sshll.u32 [#allocation5], 4
      %s55 = int_to_ptr.vmem [resolvable:$true] %s54
      %60 = dma.hbm_to_vmem [thread:$0]  %s53, 1024, %s55, [#allocation6], 64, 64, 4
    $region29: #{forward.1} parent=1 // pred_fallthru
      _
    // Predicated region
    $region30: #{forward.1} parent=1 // pred_check
      _
    $region31: #{forward.1} parent=1 // pred_check_branch
      %62 = sbr.rel (0) target = $region33
    $region32: #{forward.1} parent=1 // pred_region
      _
    $region33: #{forward.1} parent=1 // pred_fallthru
      _
    // Predicated region
    $region34: #{forward.1} parent=1 // pred_check
      _
    $region35: #{forward.1} parent=1 // pred_check_branch
      %64 = sbr.rel (0) target = $region37
    $region36: #{forward.1} parent=1 // pred_region
      %66 = vsyncadd [#allocation6], 0
      %s67 = sshll.u32 %s8, 4
      %s68 = int_to_ptr.hbm [resolvable:$true] %s67
      %s69 = sshll.u32 [#allocation7], 4
      %s70 = int_to_ptr.vmem [resolvable:$true] %s69
      %75 = dma.hbm_to_vmem [thread:$0]  %s68, 1024, %s70, [#allocation6], 64, 64, 4
    $region37: #{forward.1} parent=1 // pred_fallthru
      _
    // Predicated region
    $region38: #{forward.1} parent=1 // pred_check
      _
    $region39: #{forward.1} parent=1 // pred_check_branch
      %77 = sbr.rel (0) target = $region41
    $region40: #{forward.1} parent=1 // pred_region
      _
    $region41: #{forward.1} parent=1 // pred_fallthru
      _
    // Predicated region
    $region42: #{forward.1} parent=1 // pred_check
      _
    $region43: #{forward.1} parent=1 // pred_check_branch
      %79 = sbr.rel (0) target = $region45
    $region44: #{forward.1} parent=1 // pred_region
      %81 = vsyncadd [#allocation9], 0
      %s82 = sshll.u32 %s10, 4
      %s83 = int_to_ptr.hbm [resolvable:$true] %s82
      %s84 = sshll.u32 [#allocation8], 4
      %s85 = int_to_ptr.vmem [resolvable:$true] %s84
      %90 = dma.hbm_to_vmem [thread:$0]  %s83, 1024, %s85, [#allocation9], 64, 64, 4
    $region45: #{forward.1} parent=1 // pred_fallthru
      _
    // Predicated region
    $region46: #{forward.1} parent=1 // pred_check
      _
    $region47: #{forward.1} parent=1 // pred_check_branch
      %92 = sbr.rel (0) target = $region49
    $region48: #{forward.1} parent=1 // pred_region
      _
    $region49: #{forward.1} parent=1 // pred_fallthru
      _
    // Predicated region
    $region50: #{forward.1} parent=1 // pred_check
      _
    $region51: #{forward.1} parent=1 // pred_check_branch
      %94 = sbr.rel (0) target = $region53
    $region52: #{forward.1} parent=1 // pred_region
      _
    $region53: #{forward.1} parent=1 // pred_fallthru
      _
    // Predicated region
    $region54: #{forward.1} parent=1 // pred_check
      _
    $region55: #{forward.1} parent=1 // pred_check_branch
      %96 = sbr.rel (0) target = $region57
    $region56: #{forward.1} parent=1 // pred_region
      _
    $region57: #{forward.1} parent=1 // pred_fallthru
      _
    // Predicated region
    $region58: #{forward.1} parent=1 // pred_check
      _
    $region59: #{forward.1} parent=1 // pred_check_branch
      %98 = sbr.rel (0) target = $region61
    $region60: #{forward.1} parent=1 // pred_region
      %100 = dma.done [#allocation3], 1024
    $region61: #{forward.1} parent=1 // pred_fallthru
      _
    // Predicated region
    $region62: #{forward.1} parent=1 // pred_check
      _
    $region63: #{forward.1} parent=1 // pred_check_branch
      %102 = sbr.rel (0) target = $region65
    $region64: #{forward.1} parent=1 // pred_region
      %104 = dma.done [#allocation6], 1024
    $region65: #{forward.1} parent=1 // pred_fallthru
      _
    // Predicated region
    $region66: #{forward.1} parent=1 // pred_check
      _
    $region67: #{forward.1} parent=1 // pred_check_branch
      %106 = sbr.rel (0) target = $region69
    $region68: #{forward.1} parent=1 // pred_region
      %108 = dma.done [#allocation6], 1024
    $region69: #{forward.1} parent=1 // pred_fallthru
      _
    // Predicated region
    $region70: #{forward.1} parent=1 // pred_check
      _
    $region71: #{forward.1} parent=1 // pred_check_branch
      %110 = sbr.rel (0) target = $region73
    $region72: #{forward.1} parent=1 // pred_region
      %112 = dma.done [#allocation9], 1024
    $region73: #{forward.1} parent=1 // pred_fallthru
      _
    %v113 = vld [vmem:[%s0] sm:$0xff]
    %v114 = vld [vmem:[%s2] sm:$0xf]
    %v115 = vld [vmem:[%s2 + $0x4] sm:$0xf]
    %v116 = vld [vmem:[%s2 + $0x8] sm:$0xf]
    %v117 = vld [vmem:[%s2 + $0xc] sm:$0xf]
    %v118 = vld [vmem:[%s2 + $0x10] sm:$0xf]
    %v119 = vld [vmem:[%s2 + $0x14] sm:$0xf]
    %v120 = vld [vmem:[%s2 + $0x18] sm:$0xf]
    %v121 = vld [vmem:[%s2 + $0x1c] sm:$0xf]
    %v122 = vld [vmem:[%s2 + $0x20] sm:$0xf]
    %v123 = vld [vmem:[%s2 + $0x24] sm:$0xf]
    %v124 = vld [vmem:[%s2 + $0x28] sm:$0xf]
    %v125 = vld [vmem:[%s2 + $0x2c] sm:$0xf]
    %v126 = vld [vmem:[%s2 + $0x30] sm:$0xf]
    %v127 = vld [vmem:[%s2 + $0x34] sm:$0xf]
    %v128 = vld [vmem:[%s2 + $0x38] sm:$0xf]
    %v129 = vld [vmem:[%s2 + $0x3c] sm:$0xf]
    %v130 = vld [vmem:[%s2 + $0x40] sm:$0xf]
    %v131 = vld [vmem:[%s2 + $0x44] sm:$0xf]
    %v132 = vld [vmem:[%s2 + $0x48] sm:$0xf]
    %v133 = vld [vmem:[%s2 + $0x4c] sm:$0xf]
    %v134 = vld [vmem:[%s2 + $0x50] sm:$0xf]
    %v135 = vld [vmem:[%s2 + $0x54] sm:$0xf]
    %v136 = vld [vmem:[%s2 + $0x58] sm:$0xf]
    %v137 = vld [vmem:[%s2 + $0x5c] sm:$0xf]
    %v138 = vld [vmem:[%s2 + $0x60] sm:$0xf]
    %v139 = vld [vmem:[%s2 + $0x64] sm:$0xf]
    %v140 = vld [vmem:[%s2 + $0x68] sm:$0xf]
    %v141 = vld [vmem:[%s2 + $0x6c] sm:$0xf]
    %v142 = vld [vmem:[%s2 + $0x70] sm:$0xf]
    %v143 = vld [vmem:[%s2 + $0x74] sm:$0xf]
    %v144 = vld [vmem:[%s2 + $0x78] sm:$0xf]
    %v145 = vld [vmem:[%s2 + $0x7c] sm:$0xf]
    %v146 = vld [vmem:[%s3] sm:$0x1]
    %v148 = vperm.slane %v146, 0
    %v151 = vunpack.c.l.b16 %v113
    %v152 = vunpack.c.h.b16 %v113
    %v153 = vpack.c.b16 %v151, %v151
    %v154 = vpack.c.b16 %v152, %v152
    %v189 = vunpack.c.l.b16 %v114
    %v190 = vunpack.c.l.b16 %v115
    %v191 = vunpack.c.l.b16 %v116
    %v192 = vunpack.c.l.b16 %v117
    %v193 = vunpack.c.l.b16 %v118
    %v194 = vunpack.c.l.b16 %v119
    %v195 = vunpack.c.l.b16 %v120
    %v196 = vunpack.c.l.b16 %v121
    %v197 = vunpack.c.l.b16 %v122
    %v198 = vunpack.c.l.b16 %v123
    %v199 = vunpack.c.l.b16 %v124
    %v200 = vunpack.c.l.b16 %v125
    %v201 = vunpack.c.l.b16 %v126
    %v202 = vunpack.c.l.b16 %v127
    %v203 = vunpack.c.l.b16 %v128
    %v204 = vunpack.c.l.b16 %v129
    %v205 = vunpack.c.l.b16 %v130
    %v206 = vunpack.c.l.b16 %v131
    %v207 = vunpack.c.l.b16 %v132
    %v208 = vunpack.c.l.b16 %v133
    %v209 = vunpack.c.l.b16 %v134
    %v210 = vunpack.c.l.b16 %v135
    %v211 = vunpack.c.l.b16 %v136
    %v212 = vunpack.c.l.b16 %v137
    %v213 = vunpack.c.l.b16 %v138
    %v214 = vunpack.c.l.b16 %v139
    %v215 = vunpack.c.l.b16 %v140
    %v216 = vunpack.c.l.b16 %v141
    %v217 = vunpack.c.l.b16 %v142
    %v218 = vunpack.c.l.b16 %v143
    %v219 = vunpack.c.l.b16 %v144
    %v220 = vunpack.c.l.b16 %v145
    %v221 = vpack.c.b16 %v190, %v189
    %v222 = vpack.c.b16 %v192, %v191
    %v223 = vpack.c.b16 %v194, %v193
    %v224 = vpack.c.b16 %v196, %v195
    %v225 = vpack.c.b16 %v198, %v197
    %v226 = vpack.c.b16 %v200, %v199
    %v227 = vpack.c.b16 %v202, %v201
    %v228 = vpack.c.b16 %v204, %v203
    %v229 = vpack.c.b16 %v206, %v205
    %v230 = vpack.c.b16 %v208, %v207
    %v231 = vpack.c.b16 %v210, %v209
    %v232 = vpack.c.b16 %v212, %v211
    %v233 = vpack.c.b16 %v214, %v213
    %v234 = vpack.c.b16 %v216, %v215
    %v235 = vpack.c.b16 %v218, %v217
    %v236 = vpack.c.b16 %v220, %v219
    %253 = vmatpush.bf16.msra.mxu0 %v228
    %254 = vmatpush.bf16.msra.mxu0 %v227
    %255 = vmatpush.bf16.msra.mxu0 %v226
    %256 = vmatpush.bf16.msra.mxu0 %v225
    %257 = vmatpush.bf16.msra.mxu0 %v224
    %258 = vmatpush.bf16.msra.mxu0 %v223
    %259 = vmatpush.bf16.msra.mxu0 %v222
    %260 = vmatpush.bf16.msra.mxu0 %v221
    %261 = vmatmul.bf16.gmra.mxu0 %v153
    %v262 = vpop.f32.mrf.mxu0
    %v263 = vadd.f32 %v148, %v262
    %v264 = vpop.f32.mrf.mxu0
    %265 = vdwg.mxu0
    %266 = vmatpush.bf16.msra.mxu0 %v236
    %267 = vmatpush.bf16.msra.mxu0 %v235
    %268 = vmatpush.bf16.msra.mxu0 %v234
    %269 = vmatpush.bf16.msra.mxu0 %v233
    %270 = vmatpush.bf16.msra.mxu0 %v232
    %271 = vmatpush.bf16.msra.mxu0 %v231
    %272 = vmatpush.bf16.msra.mxu0 %v230
    %273 = vmatpush.bf16.msra.mxu0 %v229
    %274 = vmatmul.bf16.gmra.mxu0 %v154
    %v275 = vpop.f32.mrf.mxu0
    %v276 = vadd.f32 %v263, %v275
    %v277 = vpop.f32.mrf.mxu0
    %278 = vdwg.mxu0
    %v279 = vmax.f32 %v276, 0.0
    %v280 = vpack.c.bf16 %v279, %v279
    %v281 = vld [vmem:[#allocation2] sm:$0xf]
    %v282 = vld [vmem:[#allocation2 + $0x4] sm:$0xf]
    %v283 = vld [vmem:[#allocation2 + $0x8] sm:$0xf]
    %v284 = vld [vmem:[#allocation2 + $0xc] sm:$0xf]
    %v285 = vld [vmem:[#allocation2 + $0x10] sm:$0xf]
    %v286 = vld [vmem:[#allocation2 + $0x14] sm:$0xf]
    %v287 = vld [vmem:[#allocation2 + $0x18] sm:$0xf]
    %v288 = vld [vmem:[#allocation2 + $0x1c] sm:$0xf]
    %v289 = vld [vmem:[#allocation2 + $0x20] sm:$0xf]
    %v290 = vld [vmem:[#allocation2 + $0x24] sm:$0xf]
    %v291 = vld [vmem:[#allocation2 + $0x28] sm:$0xf]
    %v292 = vld [vmem:[#allocation2 + $0x2c] sm:$0xf]
    %v293 = vld [vmem:[#allocation2 + $0x30] sm:$0xf]
    %v294 = vld [vmem:[#allocation2 + $0x34] sm:$0xf]
    %v295 = vld [vmem:[#allocation2 + $0x38] sm:$0xf]
    %v296 = vld [vmem:[#allocation2 + $0x3c] sm:$0xf]
    %v297 = vld [vmem:[%s5] sm:$0x1]
    %v299 = vperm.slane %v297, 0
    %v317 = vunpack.c.l.b16 %v281
    %v318 = vunpack.c.l.b16 %v282
    %v319 = vunpack.c.l.b16 %v283
    %v320 = vunpack.c.l.b16 %v284
    %v321 = vunpack.c.l.b16 %v285
    %v322 = vunpack.c.l.b16 %v286
    %v323 = vunpack.c.l.b16 %v287
    %v324 = vunpack.c.l.b16 %v288
    %v325 = vunpack.c.l.b16 %v289
    %v326 = vunpack.c.l.b16 %v290
    %v327 = vunpack.c.l.b16 %v291
    %v328 = vunpack.c.l.b16 %v292
    %v329 = vunpack.c.l.b16 %v293
    %v330 = vunpack.c.l.b16 %v294
    %v331 = vunpack.c.l.b16 %v295
    %v332 = vunpack.c.l.b16 %v296
    %v333 = vpack.c.b16 %v318, %v317
    %v334 = vpack.c.b16 %v320, %v319
    %v335 = vpack.c.b16 %v322, %v321
    %v336 = vpack.c.b16 %v324, %v323
    %v337 = vpack.c.b16 %v326, %v325
    %v338 = vpack.c.b16 %v328, %v327
    %v339 = vpack.c.b16 %v330, %v329
    %v340 = vpack.c.b16 %v332, %v331
    %349 = vmatpush.bf16.msra.mxu0 %v340
    %350 = vmatpush.bf16.msra.mxu0 %v339
    %351 = vmatpush.bf16.msra.mxu0 %v338
    %352 = vmatpush.bf16.msra.mxu0 %v337
    %353 = vmatpush.bf16.msra.mxu0 %v336
    %354 = vmatpush.bf16.msra.mxu0 %v335
    %355 = vmatpush.bf16.msra.mxu0 %v334
    %356 = vmatpush.bf16.msra.mxu0 %v333
    %357 = vmatmul.bf16.gmra.mxu0 %v280
    %v358 = vpop.f32.mrf.mxu0
    %v359 = vadd.f32 %v299, %v358
    %v360 = vpop.f32.mrf.mxu0
    %361 = vdwg.mxu0
    %v362 = vmax.f32 %v359, 0.0
    %v363 = vpack.c.bf16 %v362, %v362
    %v364 = vld [vmem:[#allocation5] sm:$0xf]
    %v365 = vld [vmem:[#allocation5 + $0x4] sm:$0xf]
    %v366 = vld [vmem:[#allocation5 + $0x8] sm:$0xf]
    %v367 = vld [vmem:[#allocation5 + $0xc] sm:$0xf]
    %v368 = vld [vmem:[#allocation5 + $0x10] sm:$0xf]
    %v369 = vld [vmem:[#allocation5 + $0x14] sm:$0xf]
    %v370 = vld [vmem:[#allocation5 + $0x18] sm:$0xf]
    %v371 = vld [vmem:[#allocation5 + $0x1c] sm:$0xf]
    %v372 = vld [vmem:[#allocation5 + $0x20] sm:$0xf]
    %v373 = vld [vmem:[#allocation5 + $0x24] sm:$0xf]
    %v374 = vld [vmem:[#allocation5 + $0x28] sm:$0xf]
    %v375 = vld [vmem:[#allocation5 + $0x2c] sm:$0xf]
    %v376 = vld [vmem:[#allocation5 + $0x30] sm:$0xf]
    %v377 = vld [vmem:[#allocation5 + $0x34] sm:$0xf]
    %v378 = vld [vmem:[#allocation5 + $0x38] sm:$0xf]
    %v379 = vld [vmem:[#allocation5 + $0x3c] sm:$0xf]
    %v380 = vld [vmem:[%s7] sm:$0x1]
    %v382 = vperm.slane %v380, 0
    %v400 = vunpack.c.l.b16 %v364
    %v401 = vunpack.c.l.b16 %v365
    %v402 = vunpack.c.l.b16 %v366
    %v403 = vunpack.c.l.b16 %v367
    %v404 = vunpack.c.l.b16 %v368
    %v405 = vunpack.c.l.b16 %v369
    %v406 = vunpack.c.l.b16 %v370
    %v407 = vunpack.c.l.b16 %v371
    %v408 = vunpack.c.l.b16 %v372
    %v409 = vunpack.c.l.b16 %v373
    %v410 = vunpack.c.l.b16 %v374
    %v411 = vunpack.c.l.b16 %v375
    %v412 = vunpack.c.l.b16 %v376
    %v413 = vunpack.c.l.b16 %v377
    %v414 = vunpack.c.l.b16 %v378
    %v415 = vunpack.c.l.b16 %v379
    %v416 = vpack.c.b16 %v401, %v400
    %v417 = vpack.c.b16 %v403, %v402
    %v418 = vpack.c.b16 %v405, %v404
    %v419 = vpack.c.b16 %v407, %v406
    %v420 = vpack.c.b16 %v409, %v408
    %v421 = vpack.c.b16 %v411, %v410
    %v422 = vpack.c.b16 %v413, %v412
    %v423 = vpack.c.b16 %v415, %v414
    %432 = vmatpush.bf16.msra.mxu0 %v423
    %433 = vmatpush.bf16.msra.mxu0 %v422
    %434 = vmatpush.bf16.msra.mxu0 %v421
    %435 = vmatpush.bf16.msra.mxu0 %v420
    %436 = vmatpush.bf16.msra.mxu0 %v419
    %437 = vmatpush.bf16.msra.mxu0 %v418
    %438 = vmatpush.bf16.msra.mxu0 %v417
    %439 = vmatpush.bf16.msra.mxu0 %v416
    %440 = vmatmul.bf16.gmra.mxu0 %v363
    %v441 = vpop.f32.mrf.mxu0
    %v442 = vadd.f32 %v382, %v441
    %v443 = vpop.f32.mrf.mxu0
    %444 = vdwg.mxu0
    %v445 = vlaneseq
    %v446 = vand.u32 %v445, 127
    %vm447 = vcmp.ge.s32.totalorder %v446, 32
    %vm448 = vcmp.lt.s32.totalorder %v446, 64
    %vm449 = vmand %vm447, %vm448
    %v450 = vmax.f32 %v442, 0.0
    %v451 = vand.u32 2147483647, %v442
    %v452 = vsub.f32 0.0, %v451
    %v453 = vmul.f32 %v452, 1.442695
    %v454 = vpow.pop %v453
    %v455 = vadd.f32 %v454, 1.0
    %v456 = vlog2.pop %v455
    %v457 = vmul.f32 %v456, 0.6931472
    %v458 = vadd.f32 %v450, %v457
    %v459 = vsel %vm449, %v458, %v442
    %460 = vst [vmem:[%s15] sm:$0xff] %v459
    %461 = vrot.lane.b32.xlu0 %v459, 96
    %v462 = vpop.permute.xlu0 %461
    %vm463 = vcmp.lt.s32.totalorder %v446, 32
    %v464 = vsel %vm463, %v462, 0.0
    %v465 = vld [vmem:[%s1] sm:$0xff]
    %v466 = vmul.f32 %v464, 0.5
    %v467 = vmul.f32 %v466, 1.442695
    %v468 = vpow.pop %v467
    %v469 = vmul.f32 %v465, %v468
    %v470 = vadd.f32 %v469, %v459
    %v471 = vpack.c.bf16 %v470, %v470
    %v472 = vld [vmem:[#allocation7] sm:$0xf]
    %v473 = vld [vmem:[#allocation7 + $0x4] sm:$0xf]
    %v474 = vld [vmem:[#allocation7 + $0x8] sm:$0xf]
    %v475 = vld [vmem:[#allocation7 + $0xc] sm:$0xf]
    %v476 = vld [vmem:[#allocation7 + $0x10] sm:$0xf]
    %v477 = vld [vmem:[#allocation7 + $0x14] sm:$0xf]
    %v478 = vld [vmem:[#allocation7 + $0x18] sm:$0xf]
    %v479 = vld [vmem:[#allocation7 + $0x1c] sm:$0xf]
    %v480 = vld [vmem:[#allocation7 + $0x20] sm:$0xf]
    %v481 = vld [vmem:[#allocation7 + $0x24] sm:$0xf]
    %v482 = vld [vmem:[#allocation7 + $0x28] sm:$0xf]
    %v483 = vld [vmem:[#allocation7 + $0x2c] sm:$0xf]
    %v484 = vld [vmem:[#allocation7 + $0x30] sm:$0xf]
    %v485 = vld [vmem:[#allocation7 + $0x34] sm:$0xf]
    %v486 = vld [vmem:[#allocation7 + $0x38] sm:$0xf]
    %v487 = vld [vmem:[#allocation7 + $0x3c] sm:$0xf]
    %v488 = vld [vmem:[%s9] sm:$0x1]
    %v490 = vperm.slane %v488, 0
    %v508 = vunpack.c.l.b16 %v472
    %v509 = vunpack.c.l.b16 %v473
    %v510 = vunpack.c.l.b16 %v474
    %v511 = vunpack.c.l.b16 %v475
    %v512 = vunpack.c.l.b16 %v476
    %v513 = vunpack.c.l.b16 %v477
    %v514 = vunpack.c.l.b16 %v478
    %v515 = vunpack.c.l.b16 %v479
    %v516 = vunpack.c.l.b16 %v480
    %v517 = vunpack.c.l.b16 %v481
    %v518 = vunpack.c.l.b16 %v482
    %v519 = vunpack.c.l.b16 %v483
    %v520 = vunpack.c.l.b16 %v484
    %v521 = vunpack.c.l.b16 %v485
    %v522 = vunpack.c.l.b16 %v486
    %v523 = vunpack.c.l.b16 %v487
    %v524 = vpack.c.b16 %v509, %v508
    %v525 = vpack.c.b16 %v511, %v510
    %v526 = vpack.c.b16 %v513, %v512
    %v527 = vpack.c.b16 %v515, %v514
    %v528 = vpack.c.b16 %v517, %v516
    %v529 = vpack.c.b16 %v519, %v518
    %v530 = vpack.c.b16 %v521, %v520
    %v531 = vpack.c.b16 %v523, %v522
    %540 = vmatpush.bf16.msra.mxu0 %v531
    %541 = vmatpush.bf16.msra.mxu0 %v530
    %542 = vmatpush.bf16.msra.mxu0 %v529
    %543 = vmatpush.bf16.msra.mxu0 %v528
    %544 = vmatpush.bf16.msra.mxu0 %v527
    %545 = vmatpush.bf16.msra.mxu0 %v526
    %546 = vmatpush.bf16.msra.mxu0 %v525
    %547 = vmatpush.bf16.msra.mxu0 %v524
    %548 = vmatmul.bf16.gmra.mxu0 %v471
    %v549 = vpop.f32.mrf.mxu0
    %v550 = vadd.f32 %v490, %v549
    %v551 = vpop.f32.mrf.mxu0
    %552 = vdwg.mxu0
    %v553 = vmax.f32 %v550, 0.0
    %v554 = vpack.c.bf16 %v553, %v553
    %v555 = vld [vmem:[#allocation8] sm:$0xf]
    %v556 = vld [vmem:[#allocation8 + $0x4] sm:$0xf]
    %v557 = vld [vmem:[#allocation8 + $0x8] sm:$0xf]
    %v558 = vld [vmem:[#allocation8 + $0xc] sm:$0xf]
    %v559 = vld [vmem:[#allocation8 + $0x10] sm:$0xf]
    %v560 = vld [vmem:[#allocation8 + $0x14] sm:$0xf]
    %v561 = vld [vmem:[#allocation8 + $0x18] sm:$0xf]
    %v562 = vld [vmem:[#allocation8 + $0x1c] sm:$0xf]
    %v563 = vld [vmem:[#allocation8 + $0x20] sm:$0xf]
    %v564 = vld [vmem:[#allocation8 + $0x24] sm:$0xf]
    %v565 = vld [vmem:[#allocation8 + $0x28] sm:$0xf]
    %v566 = vld [vmem:[#allocation8 + $0x2c] sm:$0xf]
    %v567 = vld [vmem:[#allocation8 + $0x30] sm:$0xf]
    %v568 = vld [vmem:[#allocation8 + $0x34] sm:$0xf]
    %v569 = vld [vmem:[#allocation8 + $0x38] sm:$0xf]
    %v570 = vld [vmem:[#allocation8 + $0x3c] sm:$0xf]
    %v571 = vld [vmem:[%s11] sm:$0x1]
    %v573 = vperm.slane %v571, 0
    %v591 = vunpack.c.l.b16 %v555
    %v592 = vunpack.c.l.b16 %v556
    %v593 = vunpack.c.l.b16 %v557
    %v594 = vunpack.c.l.b16 %v558
    %v595 = vunpack.c.l.b16 %v559
    %v596 = vunpack.c.l.b16 %v560
    %v597 = vunpack.c.l.b16 %v561
    %v598 = vunpack.c.l.b16 %v562
    %v599 = vunpack.c.l.b16 %v563
    %v600 = vunpack.c.l.b16 %v564
    %v601 = vunpack.c.l.b16 %v565
    %v602 = vunpack.c.l.b16 %v566
    %v603 = vunpack.c.l.b16 %v567
    %v604 = vunpack.c.l.b16 %v568
    %v605 = vunpack.c.l.b16 %v569
    %v606 = vunpack.c.l.b16 %v570
    %v607 = vpack.c.b16 %v592, %v591
    %v608 = vpack.c.b16 %v594, %v593
    %v609 = vpack.c.b16 %v596, %v595
    %v610 = vpack.c.b16 %v598, %v597
    %v611 = vpack.c.b16 %v600, %v599
    %v612 = vpack.c.b16 %v602, %v601
    %v613 = vpack.c.b16 %v604, %v603
    %v614 = vpack.c.b16 %v606, %v605
    %623 = vmatpush.bf16.msra.mxu0 %v614
    %624 = vmatpush.bf16.msra.mxu0 %v613
    %625 = vmatpush.bf16.msra.mxu0 %v612
    %626 = vmatpush.bf16.msra.mxu0 %v611
    %627 = vmatpush.bf16.msra.mxu0 %v610
    %628 = vmatpush.bf16.msra.mxu0 %v609
    %629 = vmatpush.bf16.msra.mxu0 %v608
    %630 = vmatpush.bf16.msra.mxu0 %v607
    %631 = vmatmul.bf16.gmra.mxu0 %v554
    %v632 = vpop.f32.mrf.mxu0
    %v633 = vadd.f32 %v573, %v632
    %v634 = vpop.f32.mrf.mxu0
    %635 = vdwg.mxu0
    %v636 = vmax.f32 %v633, 0.0
    %v637 = vpack.c.bf16 %v636, %v636
    %v638 = vld [vmem:[%s12] sm:$0xff]
    %v639 = vld [vmem:[%s12 + $0x8] sm:$0xff]
    %v640 = vld [vmem:[%s12 + $0x10] sm:$0xff]
    %v641 = vld [vmem:[%s12 + $0x18] sm:$0xff]
    %v642 = vld [vmem:[%s12 + $0x20] sm:$0xff]
    %v643 = vld [vmem:[%s12 + $0x28] sm:$0xff]
    %v644 = vld [vmem:[%s12 + $0x30] sm:$0xff]
    %v645 = vld [vmem:[%s12 + $0x38] sm:$0xff]
    %v646 = vld [vmem:[%s12 + $0x40] sm:$0xff]
    %v647 = vld [vmem:[%s12 + $0x48] sm:$0xff]
    %v648 = vld [vmem:[%s12 + $0x50] sm:$0xff]
    %v649 = vld [vmem:[%s12 + $0x58] sm:$0xff]
    %v650 = vld [vmem:[%s12 + $0x60] sm:$0xff]
    %v651 = vld [vmem:[%s12 + $0x68] sm:$0xff]
    %v652 = vld [vmem:[%s12 + $0x70] sm:$0xff]
    %v653 = vld [vmem:[%s12 + $0x78] sm:$0xff]
    %v654 = vld [vmem:[%s13] sm:$0x3]
    %v656 = vperm.slane %v654, 0
    %v657 = vperm.slane %v654, 1
    %v676 = vunpack.c.l.b16 %v638
    %v677 = vunpack.c.h.b16 %v638
    %v678 = vunpack.c.l.b16 %v639
    %v679 = vunpack.c.h.b16 %v639
    %v680 = vunpack.c.l.b16 %v640
    %v681 = vunpack.c.h.b16 %v640
    %v682 = vunpack.c.l.b16 %v641
    %v683 = vunpack.c.h.b16 %v641
    %v684 = vunpack.c.l.b16 %v642
    %v685 = vunpack.c.h.b16 %v642
    %v686 = vunpack.c.l.b16 %v643
    %v687 = vunpack.c.h.b16 %v643
    %v688 = vunpack.c.l.b16 %v644
    %v689 = vunpack.c.h.b16 %v644
    %v690 = vunpack.c.l.b16 %v645
    %v691 = vunpack.c.h.b16 %v645
    %v692 = vunpack.c.l.b16 %v646
    %v693 = vunpack.c.h.b16 %v646
    %v694 = vunpack.c.l.b16 %v647
    %v695 = vunpack.c.h.b16 %v647
    %v696 = vunpack.c.l.b16 %v648
    %v697 = vunpack.c.h.b16 %v648
    %v698 = vunpack.c.l.b16 %v649
    %v699 = vunpack.c.h.b16 %v649
    %v700 = vunpack.c.l.b16 %v650
    %v701 = vunpack.c.h.b16 %v650
    %v702 = vunpack.c.l.b16 %v651
    %v703 = vunpack.c.h.b16 %v651
    %v704 = vunpack.c.l.b16 %v652
    %v705 = vunpack.c.h.b16 %v652
    %v706 = vunpack.c.l.b16 %v653
    %v707 = vunpack.c.h.b16 %v653
    %v708 = vpack.c.b16 %v678, %v676
    %v709 = vpack.c.b16 %v679, %v677
    %v710 = vpack.c.b16 %v682, %v680
    %v711 = vpack.c.b16 %v683, %v681
    %v712 = vpack.c.b16 %v686, %v684
    %v713 = vpack.c.b16 %v687, %v685
    %v714 = vpack.c.b16 %v690, %v688
    %v715 = vpack.c.b16 %v691, %v689
    %v716 = vpack.c.b16 %v694, %v692
    %v717 = vpack.c.b16 %v695, %v693
    %v718 = vpack.c.b16 %v698, %v696
    %v719 = vpack.c.b16 %v699, %v697
    %v720 = vpack.c.b16 %v702, %v700
    %v721 = vpack.c.b16 %v703, %v701
    %v722 = vpack.c.b16 %v706, %v704
    %v723 = vpack.c.b16 %v707, %v705
    %740 = vmatpush.bf16.msra.mxu0 %v722
    %741 = vmatpush.bf16.msra.mxu0 %v720
    %742 = vmatpush.bf16.msra.mxu0 %v718
    %743 = vmatpush.bf16.msra.mxu0 %v716
    %744 = vmatpush.bf16.msra.mxu0 %v714
    %745 = vmatpush.bf16.msra.mxu0 %v712
    %746 = vmatpush.bf16.msra.mxu0 %v710
    %747 = vmatpush.bf16.msra.mxu0 %v708
    %748 = vmatmul.bf16.gmra.mxu0 %v637
    %v749 = vpop.f32.mrf.mxu0
    %v750 = vadd.f32 %v656, %v749
    %v751 = vpop.f32.mrf.mxu0
    %752 = vdwg.mxu0
    %753 = vmatpush.bf16.msra.mxu0 %v723
    %754 = vmatpush.bf16.msra.mxu0 %v721
    %755 = vmatpush.bf16.msra.mxu0 %v719
    %756 = vmatpush.bf16.msra.mxu0 %v717
    %757 = vmatpush.bf16.msra.mxu0 %v715
    %758 = vmatpush.bf16.msra.mxu0 %v713
    %759 = vmatpush.bf16.msra.mxu0 %v711
    %760 = vmatpush.bf16.msra.mxu0 %v709
    %761 = vmatmul.bf16.gmra.mxu0 %v637
    %v762 = vpop.f32.mrf.mxu0
    %v763 = vadd.f32 %v657, %v762
    %v764 = vpop.f32.mrf.mxu0
    %765 = vdwg.mxu0
    %v766 = vmul.f32 %v750, 0.5
    %v767 = vmul.f32 %v763, 0.5
    %v768 = vtanh.pop %v766
    %v769 = vtanh.pop %v767
    %v770 = vmul.f32 %v768, 0.5
    %v771 = vmul.f32 %v769, 0.5
    %v772 = vadd.f32 %v770, 0.5
    %v773 = vadd.f32 %v771, 0.5
    %774 = vst [vmem:[#allocation10] sm:$0xff] %v772
    %775 = vst [vmem:[#allocation10 + $0x8] sm:$0xff] %v773
    // Predicated region
    $region74: #{forward.1} parent=1 // pred_check
      _
    $region75: #{forward.1} parent=1 // pred_check_branch
      %777 = sbr.rel (0) target = $region77
    $region76: #{forward.1} parent=1 // pred_region
      %779 = vsyncadd [#allocation4], 0
      %s781 = sshll.u32 [#allocation10], 4
      %s782 = int_to_ptr.vmem [resolvable:$true] %s781
      %s783 = sshll.u32 %s14, 4
      %s784 = int_to_ptr.hbm [resolvable:$true] %s783
      %786 = dma.vmem_to_hbm [thread:$0]  %s782, 256, %s784, [#allocation4]
    $region77: #{forward.1} parent=1 // pred_fallthru
      _
    // Predicated region
    $region78: #{forward.1} parent=1 // pred_check
      _
    $region79: #{forward.1} parent=1 // pred_check_branch
      %788 = sbr.rel (0) target = $region81
    $region80: #{forward.1} parent=1 // pred_region
      _
    $region81: #{forward.1} parent=1 // pred_fallthru
      _
    // Predicated region
    $region82: #{forward.1} parent=1 // pred_check
      _
    $region83: #{forward.1} parent=1 // pred_check_branch
      %790 = sbr.rel (0) target = $region85
    $region84: #{forward.1} parent=1 // pred_region
      %792 = dma.done [#allocation4], 256
    $region85: #{forward.1} parent=1 // pred_fallthru
      _
    // Predicated region
    $region86: #{forward.1} parent=1 // pred_check
      _
    $region87: #{forward.1} parent=1 // pred_check_branch
      %794 = sbr.rel (0) target = $region89
    $region88: #{forward.1} parent=1 // pred_region
      _
    $region89: #{forward.1} parent=1 // pred_fallthru
      _
    %795 = vsyncpa [#allocation3], 1
    %796 = vsyncpa [#allocation6], 1
    %797 = vsyncpa [#allocation9], 1
    %798 = vsyncpa [#allocation4], 1

</llo_original>
